<compile_context>
chip_gen: v7x
topology: tpu7x:2x2x1
jax: 0.10.0
libtpu: 0.0.40
codegen_flags: <defaults>
</compile_context>

<pallas_src>
import functools

import jax
import jax.numpy as jnp
from jax.experimental import pallas as pl
from jax.experimental.pallas import tpu as pltpu

N_EMBD = 64          # n_embd in the PyTorch module
HIDDEN = 4 * N_EMBD  # 4 * n_embd


def ffn_kernel(x_ref, w1_ref, b1_ref, w2_ref, b2_ref, o_ref):
    x = x_ref[...].astype(jnp.float32)                                   # (tm, C)
    h = jnp.dot(x, w1_ref[...], preferred_element_type=jnp.float32)      # (tm, 4C)
    h = jnp.maximum(h + b1_ref[...], 0.0)                                # ReLU
    y = jnp.dot(h, w2_ref[...], preferred_element_type=jnp.float32)      # (tm, C)
    y = y + b2_ref[...]
    o_ref[...] = y.astype(o_ref.dtype)


@functools.partial(jax.jit, static_argnames=("tm",))
def feedforward(x, w1, b1, w2, b2, tm=256):
    """x: (..., C).  Returns ReLU(x @ w1 + b1) @ w2 + b2 with the same shape."""
    orig_shape = x.shape
    C = orig_shape[-1]
    H = w1.shape[1]
    x2 = x.reshape(-1, C)                 # flatten batch/seq -> lane/sublane dense
    N = x2.shape[0]

    tm = min(tm, N)
    assert N % tm == 0, "row count must divide into row tiles"
    grid = (pl.cdiv(N, tm),)

    flops = 4 * N * C * H                                   # two matmuls
    bytes_accessed = 4 * (2 * N * C + 2 * C * H + H + C)    # f32 in/out + weights

    out = pl.pallas_call(
        ffn_kernel,
        out_shape=jax.ShapeDtypeStruct((N, C), x.dtype),
        grid_spec=pltpu.PrefetchScalarGridSpec(
            num_scalar_prefetch=0,
            grid=grid,
            in_specs=[
                pl.BlockSpec((tm, C), lambda i: (i, 0)),    # activations (row tile)
                pl.BlockSpec((C, H), lambda i: (0, 0)),     # W1  (grid-invariant)
                pl.BlockSpec((1, H), lambda i: (0, 0)),     # b1
                pl.BlockSpec((H, C), lambda i: (0, 0)),     # W2
                pl.BlockSpec((1, C), lambda i: (0, 0)),     # b2
            ],
            out_specs=pl.BlockSpec((tm, C), lambda i: (i, 0)),
        ),
        compiler_params=pltpu.CompilerParams(
            dimension_semantics=("parallel",)),
        cost_estimate=pl.CostEstimate(
            flops=flops, transcendentals=0, bytes_accessed=bytes_accessed),
    )(x2, w1, b1, w2, b2)
    return out.reshape(orig_shape)


def init_params(key, C=N_EMBD):
    H = 4 * C
    k1, k2, k3, k4 = jax.random.split(key, 4)
    s = 0.02
    w1 = s * jax.random.normal(k1, (C, H), jnp.float32)
    b1 = s * jax.random.normal(k2, (1, H), jnp.float32)
    w2 = s * jax.random.normal(k3, (H, C), jnp.float32)
    b2 = s * jax.random.normal(k4, (1, C), jnp.float32)
    return w1, b1, w2, b2


def feedforward_reference(x, w1, b1, w2, b2):
    """Pure-JAX reference mirroring the PyTorch forward (dropout p=0 -> no-op)."""
    hp = jax.lax.Precision.HIGHEST
    h = jnp.maximum(jnp.dot(x, w1, precision=hp) + b1, 0.0)
    return jnp.dot(h, w2, precision=hp) + b2


if __name__ == "__main__":
    key = jax.random.PRNGKey(0)
    kx, kp = jax.random.split(key)

    B, T, C = 2, 32, N_EMBD                       # small shapes consistent with module
    x = jax.random.normal(kx, (B, T, C), jnp.float32)
    w1, b1, w2, b2 = init_params(kp)

    out = feedforward(x, w1, b1, w2, b2)
    out = jax.block_until_ready(out)

    ref = feedforward_reference(x, w1, b1, w2, b2)
    assert out.shape == (B, T, C)
    err = float(jnp.max(jnp.abs(out - ref)))
    assert jnp.allclose(out, ref, atol=1e-3, rtol=1e-3), err
    print("KERNEL_OK")
</pallas_src>

<mosaic_0001>
module attributes {stable_mosaic.version = 11 : i64} {
  func.func @ffn_kernel(%arg0: i32, %arg1: memref<64x64xf32, #tpu.memory_space<vmem>>, %arg2: memref<64x256xf32, #tpu.memory_space<vmem>>, %arg3: memref<1x256xf32, #tpu.memory_space<vmem>>, %arg4: memref<256x64xf32, #tpu.memory_space<vmem>>, %arg5: memref<1x64xf32, #tpu.memory_space<vmem>>, %arg6: memref<64x64xf32, #tpu.memory_space<vmem>>) attributes {dimension_semantics = [#tpu.dimension_semantics<parallel>], iteration_bounds = array<i64: 1>, scalar_prefetch = 0 : i64, scratch_operands = 0 : i64, tpu.core_type = #tpu.core_type<tc>, window_params = [{transform_indices = @transform_0, window_bounds = array<i64: 64, 64>}, {pipeline_mode = #tpu.pipeline_mode<synchronous>, transform_indices = @transform_1, window_bounds = array<i64: 64, 256>}, {pipeline_mode = #tpu.pipeline_mode<synchronous>, transform_indices = @transform_2, window_bounds = array<i64: 1, 256>}, {pipeline_mode = #tpu.pipeline_mode<synchronous>, transform_indices = @transform_3, window_bounds = array<i64: 256, 64>}, {pipeline_mode = #tpu.pipeline_mode<synchronous>, transform_indices = @transform_4, window_bounds = array<i64: 1, 64>}, {transform_indices = @transform_5, window_bounds = array<i64: 64, 64>}]} {
    %c0 = arith.constant 0 : index
    %c0_0 = arith.constant 0 : index
    %0 = vector.load %arg1[%c0, %c0_0] : memref<64x64xf32, #tpu.memory_space<vmem>>, vector<64x64xf32>
    %c0_1 = arith.constant 0 : index
    %c0_2 = arith.constant 0 : index
    %1 = vector.load %arg2[%c0_1, %c0_2] : memref<64x256xf32, #tpu.memory_space<vmem>>, vector<64x256xf32>
    %cst = arith.constant dense<0.000000e+00> : vector<64x256xf32>
    %2 = tpu.matmul %0, %1, %cst {dimension_numbers = #tpu.dot_dimension_numbers<[1], [0], [0], [1], [0, 0, 1, 1], [], []>} : vector<64x64xf32>, vector<64x256xf32>, vector<64x256xf32> -> vector<64x256xf32>
    %c0_3 = arith.constant 0 : index
    %c0_4 = arith.constant 0 : index
    %3 = vector.load %arg3[%c0_3, %c0_4] : memref<1x256xf32, #tpu.memory_space<vmem>>, vector<1x256xf32>
    %4 = vector.broadcast %3 : vector<1x256xf32> to vector<64x256xf32>
    %5 = arith.addf %2, %4 : vector<64x256xf32>
    %cst_5 = arith.constant 0.000000e+00 : f32
    %6 = vector.broadcast %cst_5 : f32 to vector<64x256xf32>
    %7 = arith.maximumf %5, %6 : vector<64x256xf32>
    %c0_6 = arith.constant 0 : index
    %c0_7 = arith.constant 0 : index
    %8 = vector.load %arg4[%c0_6, %c0_7] : memref<256x64xf32, #tpu.memory_space<vmem>>, vector<256x64xf32>
    %cst_8 = arith.constant dense<0.000000e+00> : vector<64x64xf32>
    %9 = tpu.matmul %7, %8, %cst_8 {dimension_numbers = #tpu.dot_dimension_numbers<[1], [0], [0], [1], [0, 0, 1, 1], [], []>} : vector<64x256xf32>, vector<256x64xf32>, vector<64x64xf32> -> vector<64x64xf32>
    %c0_9 = arith.constant 0 : index
    %c0_10 = arith.constant 0 : index
    %10 = vector.load %arg5[%c0_9, %c0_10] : memref<1x64xf32, #tpu.memory_space<vmem>>, vector<1x64xf32>
    %11 = vector.broadcast %10 : vector<1x64xf32> to vector<64x64xf32>
    %12 = arith.addf %9, %11 : vector<64x64xf32>
    %c0_11 = arith.constant 0 : index
    %c0_12 = arith.constant 0 : index
    %13 = vector.load %arg6[%c0_11, %c0_12] : memref<64x64xf32, #tpu.memory_space<vmem>>, vector<64x64xf32>
    tpu.vector_store %arg6[%c0_11, %c0_12], %12 {strides = array<i32>} : memref<64x64xf32, #tpu.memory_space<vmem>>, vector<64x64xf32>,
    return
  }
  func.func @transform_0(%arg0: i32) -> (i32, i32) {
    %c0_i32 = arith.constant 0 : i32
    %c0_i32_0 = arith.constant 0 : i32
    return %arg0, %c0_i32 : i32, i32
  }
  func.func @transform_1(%arg0: i32) -> (i32, i32) {
    %c0_i32 = arith.constant 0 : i32
    %c0_i32_0 = arith.constant 0 : i32
    %c0_i32_1 = arith.constant 0 : i32
    return %c0_i32, %c0_i32_0 : i32, i32
  }
  func.func @transform_2(%arg0: i32) -> (i32, i32) {
    %c0_i32 = arith.constant 0 : i32
    %c0_i32_0 = arith.constant 0 : i32
    %c0_i32_1 = arith.constant 0 : i32
    return %c0_i32, %c0_i32_0 : i32, i32
  }
  func.func @transform_3(%arg0: i32) -> (i32, i32) {
    %c0_i32 = arith.constant 0 : i32
    %c0_i32_0 = arith.constant 0 : i32
    %c0_i32_1 = arith.constant 0 : i32
    return %c0_i32, %c0_i32_0 : i32, i32
  }
  func.func @transform_4(%arg0: i32) -> (i32, i32) {
    %c0_i32 = arith.constant 0 : i32
    %c0_i32_0 = arith.constant 0 : i32
    %c0_i32_1 = arith.constant 0 : i32
    return %c0_i32, %c0_i32_0 : i32, i32
  }
  func.func @transform_5(%arg0: i32) -> (i32, i32) {
    %c0_i32 = arith.constant 0 : i32
    %c0_i32_0 = arith.constant 0 : i32
    return %arg0, %c0_i32 : i32, i32
  }
}

</mosaic_0001>

<llo_original>
// kernel: feedforward.1
$region0: #{feedforward.1}
  #allocation0 [shape = 'u32[]', space=smem, size = 0x4, offset = 0x4, fixed_abs, tag = 'smem constant byte address 0x4 - core index']
  #allocation1 [shape = 'u32[144,128]{1,0:T(1,128)}', space=vmem, size = 0x12000, scoped, tag = 'internal scratch']
  %s0 = inlined_call_operand.vmem [shape: f32[64,64], index: 0, kind: input, shape index: {}]
  %s1 = inlined_call_operand.vmem [shape: f32[64,256], index: 1, kind: input, shape index: {}]
  %s2 = inlined_call_operand.vmem [shape: f32[1,256], index: 2, kind: input, shape index: {}]
  %s3 = inlined_call_operand.vmem [shape: f32[256,64], index: 3, kind: input, shape index: {}]
  %s4 = inlined_call_operand.vmem [shape: f32[1,64], index: 4, kind: input, shape index: {}]
  %s5 = inlined_call_operand.hbm [shape: f32[64,64], index: 5, kind: output, shape index: {}]
  %s6 = sld [smem:[#allocation0]]
  $region30: #{feedforward.1} parent=0
    _
  %s8 = ssub.s32 1, %s6
  %s9 = scalar_select 0, %s8, %s6
  $region1: #{feedforward.1} parent=0
    #allocation2 [shape = 'u8[32768]{0}', space=vmem, size = 0x8000, scoped, tag = 'output window, operand 0, single buffered']
    #allocation3 [shape = 's32[1]{0}', space=sflag, size = 0x4, scoped, tag = 'scoped memory for feedforward.1']
    %10 = vsyncpa [#allocation3], 0
    // Predicated region
    $region2: #{feedforward.1} parent=1 // pred_check
      _
    $region3: #{feedforward.1} parent=1 // pred_check_branch
      %12 = sbr.rel (0) target = $region5
    $region4: #{feedforward.1} parent=1 // pred_region
      _
    $region5: #{feedforward.1} parent=1 // pred_fallthru
      _
    // Predicated region
    $region6: #{feedforward.1} parent=1 // pred_check
      _
    $region7: #{feedforward.1} parent=1 // pred_check_branch
      %14 = sbr.rel (0) target = $region9
    $region8: #{feedforward.1} parent=1 // pred_region
      _
    $region9: #{feedforward.1} parent=1 // pred_fallthru
      _
    // Predicated region
    $region10: #{feedforward.1} parent=1 // pred_check
      _
    $region11: #{feedforward.1} parent=1 // pred_check_branch
      %16 = sbr.rel (0) target = $region13
    $region12: #{feedforward.1} parent=1 // pred_region
      _
    $region13: #{feedforward.1} parent=1 // pred_fallthru
      _
    // Predicated region
    $region14: #{feedforward.1} parent=1 // pred_check
      _
    $region15: #{feedforward.1} parent=1 // pred_check_branch
      %18 = sbr.rel (0) target = $region17
    $region16: #{feedforward.1} parent=1 // pred_region
      _
    $region17: #{feedforward.1} parent=1 // pred_fallthru
      _
    // Predicated region
    $region18: #{feedforward.1} parent=1 // pred_check
      _
    $region19: #{feedforward.1} parent=1 // pred_check_branch
      %20 = sbr.rel (0) target = $region21
    $region20: #{feedforward.1} parent=1 // pred_region
      _
    $region21: #{feedforward.1} parent=1 // pred_fallthru
      _
    %v21 = vld [vmem:[%s0] sm:$0xff]
    %v22 = vld [vmem:[%s0 + $0x8] sm:$0xff]
    %v23 = vld [vmem:[%s0 + $0x10] sm:$0xff]
    %v24 = vld [vmem:[%s0 + $0x18] sm:$0xff]
    %v25 = vld [vmem:[%s0 + $0x20] sm:$0xff]
    %v26 = vld [vmem:[%s0 + $0x28] sm:$0xff]
    %v27 = vld [vmem:[%s0 + $0x30] sm:$0xff]
    %v28 = vld [vmem:[%s0 + $0x38] sm:$0xff]
    %v29 = vld [vmem:[%s1] sm:$0xff]
    %v30 = vld [vmem:[%s1 + $0x8] sm:$0xff]
    %v31 = vld [vmem:[%s1 + $0x10] sm:$0xff]
    %v32 = vld [vmem:[%s1 + $0x18] sm:$0xff]
    %v33 = vld [vmem:[%s1 + $0x20] sm:$0xff]
    %v34 = vld [vmem:[%s1 + $0x28] sm:$0xff]
    %v35 = vld [vmem:[%s1 + $0x30] sm:$0xff]
    %v36 = vld [vmem:[%s1 + $0x38] sm:$0xff]
    %v37 = vld [vmem:[%s1 + $0x40] sm:$0xff]
    %v38 = vld [vmem:[%s1 + $0x48] sm:$0xff]
    %v39 = vld [vmem:[%s1 + $0x50] sm:$0xff]
    %v40 = vld [vmem:[%s1 + $0x58] sm:$0xff]
    %v41 = vld [vmem:[%s1 + $0x60] sm:$0xff]
    %v42 = vld [vmem:[%s1 + $0x68] sm:$0xff]
    %v43 = vld [vmem:[%s1 + $0x70] sm:$0xff]
    %v44 = vld [vmem:[%s1 + $0x78] sm:$0xff]
    %v45 = vld [vmem:[%s2] sm:$0x3]
    %v47 = vlaneseq
    %v48 = vshrl.u32 %v47, 7
    %v49 = vsub.s32 0, %v48
    %v50 = vrot.slane %v45, %v49
    %v51 = vlaneseq
    %v52 = vshrl.u32 %v51, 7
    %v53 = vsub.s32 1, %v52
    %v54 = vrot.slane %v45, %v53
    %vm57 = vcmask 523264
    %v59 = vsel %vm57, %v21, 0
    %v62 = vsel %vm57, %v22, 0
    %v65 = vsel %vm57, %v23, 0
    %v68 = vsel %vm57, %v24, 0
    %v71 = vsel %vm57, %v25, 0
    %v74 = vsel %vm57, %v26, 0
    %v77 = vsel %vm57, %v27, 0
    %v80 = vsel %vm57, %v28, 0
    %82 = vmatprep.subr.mxu0 %v30
    %83 = vmatpush1.msra.mxu0 %v29
    %84 = vmatprep.subr.mxu0 %v32
    %85 = vmatpush1.msra.mxu0 %v31
    %86 = vmatprep.subr.mxu0 %v34
    %87 = vmatpush1.msra.mxu0 %v33
    %88 = vmatprep.subr.mxu0 %v36
    %89 = vmatpush1.msra.mxu0 %v35
    %90 = vmatprep.subr.mxu0 %v38
    %91 = vmatpush1.msra.mxu0 %v37
    %92 = vmatprep.subr.mxu0 %v40
    %93 = vmatpush1.msra.mxu0 %v39
    %94 = vmatprep.subr.mxu0 %v42
    %95 = vmatpush1.msra.mxu0 %v41
    %96 = vmatprep.subr.mxu0 %v44
    %97 = vmatpush1.msra.mxu0 %v43
    %98 = vmatprep.subr.mxu0 0.0
    %99 = vmatpush1.msra.mxu0 0.0
    %100 = vmatprep.subr.mxu0 0.0
    %101 = vmatpush1.msra.mxu0 0.0
    %102 = vmatprep.subr.mxu0 0.0
    %103 = vmatpush1.msra.mxu0 0.0
    %104 = vmatprep.subr.mxu0 0.0
    %105 = vmatpush1.msra.mxu0 0.0
    %106 = vmatprep.subr.mxu0 0.0
    %107 = vmatpush1.msra.mxu0 0.0
    %108 = vmatprep.subr.mxu0 0.0
    %109 = vmatpush1.msra.mxu0 0.0
    %110 = vmatprep.subr.mxu0 0.0
    %111 = vmatpush1.msra.mxu0 0.0
    %112 = vmatprep.subr.mxu0 0.0
    %113 = vmatpush1.msra.mxu0 0.0
    %114 = vmatprep.subr.mxu0 0.0
    %115 = vmatpush1.msra.mxu0 0.0
    %116 = vmatprep.subr.mxu0 0.0
    %117 = vmatpush1.msra.mxu0 0.0
    %118 = vmatprep.subr.mxu0 0.0
    %119 = vmatpush1.msra.mxu0 0.0
    %120 = vmatprep.subr.mxu0 0.0
    %121 = vmatpush1.msra.mxu0 0.0
    %122 = vmatprep.subr.mxu0 0.0
    %123 = vmatpush1.msra.mxu0 0.0
    %124 = vmatprep.subr.mxu0 0.0
    %125 = vmatpush1.msra.mxu0 0.0
    %126 = vmatprep.subr.mxu0 0.0
    %127 = vmatpush1.msra.mxu0 0.0
    %128 = vmatprep.subr.mxu0 0.0
    %129 = vmatpush1.msra.mxu0 0.0
    %130 = vmatprep.subr.mxu0 0.0
    %131 = vmatpush1.msra.mxu0 0.0
    %132 = vmatprep.subr.mxu0 0.0
    %133 = vmatpush1.msra.mxu0 0.0
    %134 = vmatprep.subr.mxu0 0.0
    %135 = vmatpush1.msra.mxu0 0.0
    %136 = vmatprep.subr.mxu0 0.0
    %137 = vmatpush1.msra.mxu0 0.0
    %138 = vmatprep.subr.mxu0 0.0
    %139 = vmatpush1.msra.mxu0 0.0
    %140 = vmatprep.subr.mxu0 0.0
    %141 = vmatpush1.msra.mxu0 0.0
    %142 = vmatprep.subr.mxu0 0.0
    %143 = vmatpush1.msra.mxu0 0.0
    %144 = vmatprep.subr.mxu0 0.0
    %145 = vmatpush1.msra.mxu0 0.0
    %146 = vmatprep.mubr.f32.mxu0 0.0
    %147 = vmatmul.mubr.f32.gmra.mrb[0].mxu0 %v59
    %v148 = vpop.f32.mrb[0].mxu0
    %v149 = vadd.f32 %v50, %v148
    %v150 = vpop.f32.mrb[0].mxu0
    %v151 = vadd.f32 %v54, %v150
    %152 = vmatprep.mubr.f32.mxu0 0.0
    %153 = vmatmul.mubr.f32.gmra.mrb[0].mxu0 %v62
    %v154 = vpop.f32.mrb[0].mxu0
    %v155 = vadd.f32 %v50, %v154
    %v156 = vpop.f32.mrb[0].mxu0
    %v157 = vadd.f32 %v54, %v156
    %158 = vmatprep.mubr.f32.mxu0 0.0
    %159 = vmatmul.mubr.f32.gmra.mrb[0].mxu0 %v65
    %v160 = vpop.f32.mrb[0].mxu0
    %v161 = vadd.f32 %v50, %v160
    %v162 = vpop.f32.mrb[0].mxu0
    %v163 = vadd.f32 %v54, %v162
    %164 = vmatprep.mubr.f32.mxu0 0.0
    %165 = vmatmul.mubr.f32.gmra.mrb[0].mxu0 %v68
    %v166 = vpop.f32.mrb[0].mxu0
    %v167 = vadd.f32 %v50, %v166
    %v168 = vpop.f32.mrb[0].mxu0
    %v169 = vadd.f32 %v54, %v168
    %170 = vmatprep.mubr.f32.mxu0 0.0
    %171 = vmatmul.mubr.f32.gmra.mrb[0].mxu0 %v71
    %v172 = vpop.f32.mrb[0].mxu0
    %v173 = vadd.f32 %v50, %v172
    %v174 = vpop.f32.mrb[0].mxu0
    %v175 = vadd.f32 %v54, %v174
    %176 = vmatprep.mubr.f32.mxu0 0.0
    %177 = vmatmul.mubr.f32.gmra.mrb[0].mxu0 %v74
    %v178 = vpop.f32.mrb[0].mxu0
    %v179 = vadd.f32 %v50, %v178
    %v180 = vpop.f32.mrb[0].mxu0
    %v181 = vadd.f32 %v54, %v180
    %182 = vmatprep.mubr.f32.mxu0 0.0
    %183 = vmatmul.mubr.f32.gmra.mrb[0].mxu0 %v77
    %v184 = vpop.f32.mrb[0].mxu0
    %v185 = vadd.f32 %v50, %v184
    %v186 = vpop.f32.mrb[0].mxu0
    %v187 = vadd.f32 %v54, %v186
    %188 = vmatprep.mubr.f32.mxu0 0.0
    %189 = vmatmul.mubr.f32.gmra.mrb[0].mxu0 %v80
    %v190 = vpop.f32.mrb[0].mxu0
    %v191 = vadd.f32 %v50, %v190
    %v192 = vpop.f32.mrb[0].mxu0
    %v193 = vadd.f32 %v54, %v192
    %194 = vdwg.mxu0
    %v195 = vmax.f32 %v149, 0.0
    %v196 = vmax.f32 %v151, 0.0
    %v197 = vmax.f32 %v155, 0.0
    %v198 = vmax.f32 %v157, 0.0
    %v199 = vmax.f32 %v161, 0.0
    %v200 = vmax.f32 %v163, 0.0
    %v201 = vmax.f32 %v167, 0.0
    %v202 = vmax.f32 %v169, 0.0
    %v203 = vmax.f32 %v173, 0.0
    %v204 = vmax.f32 %v175, 0.0
    %v205 = vmax.f32 %v179, 0.0
    %v206 = vmax.f32 %v181, 0.0
    %v207 = vmax.f32 %v185, 0.0
    %v208 = vmax.f32 %v187, 0.0
    %v209 = vmax.f32 %v191, 0.0
    %v210 = vmax.f32 %v193, 0.0
    %v211 = vld [vmem:[%s3] sm:$0xff]
    %v212 = vld [vmem:[%s3 + $0x8] sm:$0xff]
    %v213 = vld [vmem:[%s3 + $0x10] sm:$0xff]
    %v214 = vld [vmem:[%s3 + $0x18] sm:$0xff]
    %v215 = vld [vmem:[%s3 + $0x20] sm:$0xff]
    %v216 = vld [vmem:[%s3 + $0x28] sm:$0xff]
    %v217 = vld [vmem:[%s3 + $0x30] sm:$0xff]
    %v218 = vld [vmem:[%s3 + $0x38] sm:$0xff]
    %v219 = vld [vmem:[%s3 + $0x40] sm:$0xff]
    %v220 = vld [vmem:[%s3 + $0x48] sm:$0xff]
    %v221 = vld [vmem:[%s3 + $0x50] sm:$0xff]
    %v222 = vld [vmem:[%s3 + $0x58] sm:$0xff]
    %v223 = vld [vmem:[%s3 + $0x60] sm:$0xff]
    %v224 = vld [vmem:[%s3 + $0x68] sm:$0xff]
    %v225 = vld [vmem:[%s3 + $0x70] sm:$0xff]
    %v226 = vld [vmem:[%s3 + $0x78] sm:$0xff]
    %v227 = vld [vmem:[%s3 + $0x80] sm:$0xff]
    %v228 = vld [vmem:[%s3 + $0x88] sm:$0xff]
    %v229 = vld [vmem:[%s3 + $0x90] sm:$0xff]
    %v230 = vld [vmem:[%s3 + $0x98] sm:$0xff]
    %v231 = vld [vmem:[%s3 + $0xa0] sm:$0xff]
    %v232 = vld [vmem:[%s3 + $0xa8] sm:$0xff]
    %v233 = vld [vmem:[%s3 + $0xb0] sm:$0xff]
    %v234 = vld [vmem:[%s3 + $0xb8] sm:$0xff]
    %v235 = vld [vmem:[%s3 + $0xc0] sm:$0xff]
    %v236 = vld [vmem:[%s3 + $0xc8] sm:$0xff]
    %v237 = vld [vmem:[%s3 + $0xd0] sm:$0xff]
    %v238 = vld [vmem:[%s3 + $0xd8] sm:$0xff]
    %v239 = vld [vmem:[%s3 + $0xe0] sm:$0xff]
    %v240 = vld [vmem:[%s3 + $0xe8] sm:$0xff]
    %v241 = vld [vmem:[%s3 + $0xf0] sm:$0xff]
    %v242 = vld [vmem:[%s3 + $0xf8] sm:$0xff]
    %v243 = vld [vmem:[%s4] sm:$0x1]
    %v245 = vlaneseq
    %v246 = vshrl.u32 %v245, 7
    %v247 = vsub.s32 0, %v246
    %v248 = vrot.slane %v243, %v247
    %250 = vmatprep.subr.mxu0 0.0
    %251 = vmatpush1.msra.mxu0 %v211
    %252 = vmatprep.subr.mxu0 0.0
    %253 = vmatpush1.msra.mxu0 %v212
    %254 = vmatprep.subr.mxu0 0.0
    %255 = vmatpush1.msra.mxu0 %v213
    %256 = vmatprep.subr.mxu0 0.0
    %257 = vmatpush1.msra.mxu0 %v214
    %258 = vmatprep.subr.mxu0 0.0
    %259 = vmatpush1.msra.mxu0 %v215
    %260 = vmatprep.subr.mxu0 0.0
    %261 = vmatpush1.msra.mxu0 %v216
    %262 = vmatprep.subr.mxu0 0.0
    %263 = vmatpush1.msra.mxu0 %v217
    %264 = vmatprep.subr.mxu0 0.0
    %265 = vmatpush1.msra.mxu0 %v218
    %266 = vmatprep.subr.mxu0 0.0
    %267 = vmatpush1.msra.mxu0 %v219
    %268 = vmatprep.subr.mxu0 0.0
    %269 = vmatpush1.msra.mxu0 %v220
    %270 = vmatprep.subr.mxu0 0.0
    %271 = vmatpush1.msra.mxu0 %v221
    %272 = vmatprep.subr.mxu0 0.0
    %273 = vmatpush1.msra.mxu0 %v222
    %274 = vmatprep.subr.mxu0 0.0
    %275 = vmatpush1.msra.mxu0 %v223
    %276 = vmatprep.subr.mxu0 0.0
    %277 = vmatpush1.msra.mxu0 %v224
    %278 = vmatprep.subr.mxu0 0.0
    %279 = vmatpush1.msra.mxu0 %v225
    %280 = vmatprep.subr.mxu0 0.0
    %281 = vmatpush1.msra.mxu0 %v226
    %282 = vmatprep.subr.mxu0 0.0
    %283 = vmatpush1.msra.mxu0 %v227
    %284 = vmatprep.subr.mxu0 0.0
    %285 = vmatpush1.msra.mxu0 %v228
    %286 = vmatprep.subr.mxu0 0.0
    %287 = vmatpush1.msra.mxu0 %v229
    %288 = vmatprep.subr.mxu0 0.0
    %289 = vmatpush1.msra.mxu0 %v230
    %290 = vmatprep.subr.mxu0 0.0
    %291 = vmatpush1.msra.mxu0 %v231
    %292 = vmatprep.subr.mxu0 0.0
    %293 = vmatpush1.msra.mxu0 %v232
    %294 = vmatprep.subr.mxu0 0.0
    %295 = vmatpush1.msra.mxu0 %v233
    %296 = vmatprep.subr.mxu0 0.0
    %297 = vmatpush1.msra.mxu0 %v234
    %298 = vmatprep.subr.mxu0 0.0
    %299 = vmatpush1.msra.mxu0 %v235
    %300 = vmatprep.subr.mxu0 0.0
    %301 = vmatpush1.msra.mxu0 %v236
    %302 = vmatprep.subr.mxu0 0.0
    %303 = vmatpush1.msra.mxu0 %v237
    %304 = vmatprep.subr.mxu0 0.0
    %305 = vmatpush1.msra.mxu0 %v238
    %306 = vmatprep.subr.mxu0 0.0
    %307 = vmatpush1.msra.mxu0 %v239
    %308 = vmatprep.subr.mxu0 0.0
    %309 = vmatpush1.msra.mxu0 %v240
    %310 = vmatprep.subr.mxu0 0.0
    %311 = vmatpush1.msra.mxu0 %v241
    %312 = vmatprep.subr.mxu0 0.0
    %313 = vmatpush1.msra.mxu0 %v242
    %314 = vmatprep.mubr.f32.mxu0 %v196
    %315 = vmatmul.mubr.f32.gmra.mrb[0].mxu0 %v195
    %v316 = vpop.f32.mrb[0].mxu0
    %v317 = vadd.f32 %v248, %v316
    %v318 = vpop.f32.mrb[0].mxu0
    %319 = vmatprep.mubr.f32.mxu0 %v198
    %320 = vmatmul.mubr.f32.gmra.mrb[0].mxu0 %v197
    %v321 = vpop.f32.mrb[0].mxu0
    %v322 = vadd.f32 %v248, %v321
    %v323 = vpop.f32.mrb[0].mxu0
    %324 = vmatprep.mubr.f32.mxu0 %v200
    %325 = vmatmul.mubr.f32.gmra.mrb[0].mxu0 %v199
    %v326 = vpop.f32.mrb[0].mxu0
    %v327 = vadd.f32 %v248, %v326
    %v328 = vpop.f32.mrb[0].mxu0
    %329 = vmatprep.mubr.f32.mxu0 %v202
    %330 = vmatmul.mubr.f32.gmra.mrb[0].mxu0 %v201
    %v331 = vpop.f32.mrb[0].mxu0
    %v332 = vadd.f32 %v248, %v331
    %v333 = vpop.f32.mrb[0].mxu0
    %334 = vmatprep.mubr.f32.mxu0 %v204
    %335 = vmatmul.mubr.f32.gmra.mrb[0].mxu0 %v203
    %v336 = vpop.f32.mrb[0].mxu0
    %v337 = vadd.f32 %v248, %v336
    %v338 = vpop.f32.mrb[0].mxu0
    %339 = vmatprep.mubr.f32.mxu0 %v206
    %340 = vmatmul.mubr.f32.gmra.mrb[0].mxu0 %v205
    %v341 = vpop.f32.mrb[0].mxu0
    %v342 = vadd.f32 %v248, %v341
    %v343 = vpop.f32.mrb[0].mxu0
    %344 = vmatprep.mubr.f32.mxu0 %v208
    %345 = vmatmul.mubr.f32.gmra.mrb[0].mxu0 %v207
    %v346 = vpop.f32.mrb[0].mxu0
    %v347 = vadd.f32 %v248, %v346
    %v348 = vpop.f32.mrb[0].mxu0
    %349 = vmatprep.mubr.f32.mxu0 %v210
    %350 = vmatmul.mubr.f32.gmra.mrb[0].mxu0 %v209
    %v351 = vpop.f32.mrb[0].mxu0
    %v352 = vadd.f32 %v248, %v351
    %v353 = vpop.f32.mrb[0].mxu0
    %354 = vdwg.mxu0
    %355 = vst.msk [vmem:[#allocation2] sm:$0xff] %vm57, %v317
    %356 = vst.msk [vmem:[#allocation2 + $0x8] sm:$0xff] %vm57, %v322
    %357 = vst.msk [vmem:[#allocation2 + $0x10] sm:$0xff] %vm57, %v327
    %358 = vst.msk [vmem:[#allocation2 + $0x18] sm:$0xff] %vm57, %v332
    %359 = vst.msk [vmem:[#allocation2 + $0x20] sm:$0xff] %vm57, %v337
    %360 = vst.msk [vmem:[#allocation2 + $0x28] sm:$0xff] %vm57, %v342
    %361 = vst.msk [vmem:[#allocation2 + $0x30] sm:$0xff] %vm57, %v347
    %362 = vst.msk [vmem:[#allocation2 + $0x38] sm:$0xff] %vm57, %v352
    // Predicated region
    $region22: #{feedforward.1} parent=1 // pred_check
      _
    $region23: #{feedforward.1} parent=1 // pred_check_branch
      %364 = sbr.rel (0) target = $region25
    $region24: #{feedforward.1} parent=1 // pred_region
      %s366 = ssub.s32 1024, 1024
      %367 = vsyncadd [#allocation3], %s366
      %s368 = sshll.u32 [#allocation2], 4
      %s369 = int_to_ptr.vmem [resolvable:$true] %s368
      %374 = dma.vmem_to_hbm [thread:$0]  %s369, 1024, %s5, [#allocation3], 128, 128, 8
    $region25: #{feedforward.1} parent=1 // pred_fallthru
      _
    // Predicated region
    $region26: #{feedforward.1} parent=1 // pred_check
      _
    $region27: #{feedforward.1} parent=1 // pred_check_branch
      %376 = sbr.rel (0) target = $region29
    $region28: #{feedforward.1} parent=1 // pred_region
      %377 = dma.done [#allocation3], 1024
    $region29: #{feedforward.1} parent=1 // pred_fallthru
      _
    %378 = vsyncpa [#allocation3], 1

</llo_original>
